<compile_context>
chip_gen: v5e
topology: v5e:2x2
jax: 0.10.0
libtpu: 0.0.40
codegen_flags: <defaults>
</compile_context>

<pallas_src>
import functools

import jax
import jax.numpy as jnp
from jax import lax
from jax.experimental import pallas as pl
from jax.experimental.pallas import tpu as pltpu


def _dora_kernel(alpha, x_ref, w_ref, b_ref, a_ref, bb_ref, g_ref, m_ref,
                 o_ref, acc_ref, xa_ref):
    j = pl.program_id(1)           # out-feature tile
    k = pl.program_id(2)           # in-feature (reduction) tile
    nk = pl.num_programs(2)

    @pl.when(k == 0)
    def _():
        acc_ref[...] = jnp.zeros_like(acc_ref)

    x = x_ref[...]                                             # [tm, tk]

    # Base linear path: x[tm,tk] · W[tn,tk] contracting on the in-feature axis
    # (W stays in PyTorch [out, in] layout -> no wrapper transpose needed).
    acc_ref[...] += lax.dot_general(
        x, w_ref[...],
        dimension_numbers=(((1,), (1,)), ((), ())),
        preferred_element_type=jnp.float32)                    # [tm, tn]

    # LoRA xa = x @ A, accumulated over k only on the first out-tile pass;
    # the scratch persists across grid steps and is reused for every j.
    @pl.when(j == 0)
    def _():
        @pl.when(k == 0)
        def _():
            xa_ref[...] = jnp.zeros_like(xa_ref)
        xa_ref[...] += jnp.dot(x, a_ref[...],
                               preferred_element_type=jnp.float32)   # [tm, r]

    @pl.when(k == nk - 1)
    def _():
        xa = xa_ref[...]                                       # [tm, r]
        # This tile's slice of the LoRA output.
        lora = alpha * jnp.dot(xa, bb_ref[...],
                               preferred_element_type=jnp.float32)   # [tm, tn]
        # Row-wise ||lora_row||^2 over the FULL out_dim via G = B @ B^T  ([r, r]).
        sq = (alpha * alpha) * jnp.sum(
            jnp.dot(xa, g_ref[...], preferred_element_type=jnp.float32) * xa,
            axis=1, keepdims=True)                             # [tm, 1]
        inv = pl.reciprocal(jnp.sqrt(sq) + 1e-9, approx=True)  # EUP slot, ~free
        o_ref[...] = (acc_ref[...] + b_ref[...]
                      + m_ref[...] * (lora * inv)).astype(o_ref.dtype)


def _pick_tile(dim, preferred, align):
    """Largest tile <= preferred that divides dim (aligned), else the full dim."""
    if dim <= preferred:
        return dim
    if dim % preferred == 0:
        return preferred
    t = (preferred // align) * align
    while t >= align:
        if dim % t == 0:
            return t
        t -= align
    return dim


def linear_with_dora(x, w, b, A, B, m, alpha, *, tm=256, tn=512, tk=512):
    """x:[N,in], w:[out,in] (PyTorch layout), b:[out], A:[in,r], B:[r,out], m:[1,out]."""
    N, in_dim = x.shape
    out_dim = w.shape[0]
    rank = A.shape[1]

    # Tile sizes: 256/512 defaults fit v7x's 64 MiB VMEM with headroom and are
    # 128/256-aligned for v5e/v6e MXU shapes; toy shapes fall back to full dims.
    tm = _pick_tile(N, tm, 8)
    tn = _pick_tile(out_dim, tn, 128)
    tk = _pick_tile(in_dim, tk, 128)

    b2 = b.reshape(1, out_dim)
    G = jnp.dot(B, B.T)                       # [r, r] Gram matrix (tiny)

    grid = (N // tm, out_dim // tn, in_dim // tk)

    kernel = functools.partial(_dora_kernel, float(alpha))

    return pl.pallas_call(
        kernel,
        out_shape=jax.ShapeDtypeStruct((N, out_dim), jnp.float32),
        grid_spec=pltpu.PrefetchScalarGridSpec(
            num_scalar_prefetch=0,
            grid=grid,
            in_specs=[
                pl.BlockSpec((tm, tk),       lambda i, j, k: (i, k)),   # x
                pl.BlockSpec((tn, tk),       lambda i, j, k: (j, k)),   # W [out, in]
                pl.BlockSpec((1, tn),        lambda i, j, k: (0, j)),   # bias
                pl.BlockSpec((tk, rank),     lambda i, j, k: (k, 0)),   # A
                pl.BlockSpec((rank, tn),     lambda i, j, k: (0, j)),   # B
                pl.BlockSpec((rank, rank),   lambda i, j, k: (0, 0)),   # G = B @ B^T
                pl.BlockSpec((1, tn),        lambda i, j, k: (0, j)),   # m
            ],
            out_specs=pl.BlockSpec((tm, tn), lambda i, j, k: (i, j)),
            scratch_shapes=[
                pltpu.VMEM((tm, tn), jnp.float32),      # linear accumulator
                pltpu.VMEM((tm, rank), jnp.float32),    # xa = x @ A (persists across j)
            ],
        ),
        compiler_params=pltpu.CompilerParams(
            dimension_semantics=("parallel", "arbitrary", "arbitrary"),
            vmem_limit_bytes=32 * 1024 * 1024,
        ),
    )(x, w, b2, A, B, G, m)


def _reference(x, w, b, A, B, m, alpha):
    linear_out = x @ w.T + b
    lora_out = alpha * (x @ A @ B)
    norm = jnp.sqrt(jnp.sum(lora_out * lora_out, axis=1, keepdims=True))
    lora_norm = lora_out / (norm + 1e-9)
    return linear_out + m * lora_norm


def _make_inputs(key, batch, in_dim, out_dim, rank):
    kx, kw, kb, ka, kB, km = jax.random.split(key, 6)
    x = jax.random.normal(kx, (batch, in_dim), dtype=jnp.float32)
    # NOTE: the module initializes B to zeros and m to ones; use nonzero random
    # values here so the DoRA path is actually exercised.
    w = jax.random.normal(kw, (out_dim, in_dim), dtype=jnp.float32) / jnp.sqrt(in_dim)
    b = jax.random.normal(kb, (out_dim,), dtype=jnp.float32) * 0.1
    A = jax.random.normal(ka, (in_dim, rank), dtype=jnp.float32) / jnp.sqrt(rank)
    B = jax.random.normal(kB, (rank, out_dim), dtype=jnp.float32) * 0.1
    m = 1.0 + 0.1 * jax.random.normal(km, (1, out_dim), dtype=jnp.float32)
    return x, w, b, A, B, m


if __name__ == "__main__":
    key = jax.random.PRNGKey(0)
    k_small, k_big = jax.random.split(key)

    # Small shapes consistent with the module: batch=8, in=32, out=64, rank=8, alpha=2.
    batch, in_dim, out_dim, rank, alpha = 8, 32, 64, 8, 2.0
    x, w, b, A, B, m = _make_inputs(k_small, batch, in_dim, out_dim, rank)
    out = jax.block_until_ready(linear_with_dora(x, w, b, A, B, m, alpha))
    ref = _reference(x, w, b, A, B, m, alpha)
    assert out.shape == (batch, out_dim)
    assert jnp.allclose(out, ref, atol=1e-3, rtol=1e-3), "small-shape mismatch"

    # Moderate shapes to exercise the actual tiled path (multi-tile j and k).
    batch2, in2, out2, rank2, alpha2 = 256, 1024, 1024, 16, 2.0
    x2, w2, b2, A2, B2, m2 = _make_inputs(k_big, batch2, in2, out2, rank2)
    out2_ = jax.block_until_ready(linear_with_dora(x2, w2, b2, A2, B2, m2, alpha2))
    ref2 = _reference(x2, w2, b2, A2, B2, m2, alpha2)
    assert out2_.shape == (batch2, out2)
    assert jnp.allclose(out2_, ref2, atol=1e-3, rtol=1e-3), "tiled-shape mismatch"

    print("KERNEL_OK")
</pallas_src>

<mosaic_0001>
module attributes {stable_mosaic.version = 11 : i64} {
  func.func @_dora_kernel(%arg0: i32, %arg1: i32, %arg2: i32, %arg3: memref<8x32xf32, #tpu.memory_space<vmem>>, %arg4: memref<64x32xf32, #tpu.memory_space<vmem>>, %arg5: memref<1x64xf32, #tpu.memory_space<vmem>>, %arg6: memref<32x8xf32, #tpu.memory_space<vmem>>, %arg7: memref<8x64xf32, #tpu.memory_space<vmem>>, %arg8: memref<8x8xf32, #tpu.memory_space<vmem>>, %arg9: memref<1x64xf32, #tpu.memory_space<vmem>>, %arg10: memref<8x64xf32, #tpu.memory_space<vmem>>, %arg11: memref<8x64xf32, #tpu.memory_space<vmem>>, %arg12: memref<8x8xf32, #tpu.memory_space<vmem>>) attributes {dimension_semantics = [#tpu.dimension_semantics<parallel>, #tpu.dimension_semantics<arbitrary>, #tpu.dimension_semantics<arbitrary>], iteration_bounds = array<i64: 1, 1, 1>, scalar_prefetch = 0 : i64, scratch_operands = 2 : i64, tpu.core_type = #tpu.core_type<tc>, window_params = [{transform_indices = @transform_0, window_bounds = array<i64: 8, 32>}, {transform_indices = @transform_1, window_bounds = array<i64: 64, 32>}, {transform_indices = @transform_2, window_bounds = array<i64: 1, 64>}, {transform_indices = @transform_3, window_bounds = array<i64: 32, 8>}, {transform_indices = @transform_4, window_bounds = array<i64: 8, 64>}, {pipeline_mode = #tpu.pipeline_mode<synchronous>, transform_indices = @transform_5, window_bounds = array<i64: 8, 8>}, {transform_indices = @transform_6, window_bounds = array<i64: 1, 64>}, {transform_indices = @transform_7, window_bounds = array<i64: 8, 64>}]} {
    %c0_i32 = arith.constant 0 : i32
    %0 = arith.cmpi eq, %arg2, %c0_i32 : i32
    %1 = arith.extui %0 : i1 to i32
    %c0_i32_0 = arith.constant 0 : i32
    %2 = arith.cmpi ne, %1, %c0_i32_0 : i32
    scf.if %2 {
      %cst_12 = arith.constant 0.000000e+00 : f32
      %15 = vector.broadcast %cst_12 : f32 to vector<8x64xf32>
      %c0_13 = arith.constant 0 : index
      %c0_14 = arith.constant 0 : index
      %16 = vector.load %arg11[%c0_13, %c0_14] : memref<8x64xf32, #tpu.memory_space<vmem>>, vector<8x64xf32>
      tpu.vector_store %arg11[%c0_13, %c0_14], %15 {strides = array<i32>} : memref<8x64xf32, #tpu.memory_space<vmem>>, vector<8x64xf32>,
    } else {
    }
    %c0 = arith.constant 0 : index
    %c0_1 = arith.constant 0 : index
    %3 = vector.load %arg3[%c0, %c0_1] : memref<8x32xf32, #tpu.memory_space<vmem>>, vector<8x32xf32>
    %c0_2 = arith.constant 0 : index
    %c0_3 = arith.constant 0 : index
    %4 = vector.load %arg11[%c0_2, %c0_3] : memref<8x64xf32, #tpu.memory_space<vmem>>, vector<8x64xf32>
    %c0_4 = arith.constant 0 : index
    %c0_5 = arith.constant 0 : index
    %5 = vector.load %arg4[%c0_4, %c0_5] : memref<64x32xf32, #tpu.memory_space<vmem>>, vector<64x32xf32>
    %cst = arith.constant dense<0.000000e+00> : vector<8x64xf32>
    %6 = tpu.matmul %3, %5, %cst {dimension_numbers = #tpu.dot_dimension_numbers<[1], [1], [0], [0], [0, 0, 1, 0], [], []>} : vector<8x32xf32>, vector<64x32xf32>, vector<8x64xf32> -> vector<8x64xf32>
    %7 = arith.addf %4, %6 : vector<8x64xf32>
    %c0_6 = arith.constant 0 : index
    %c0_7 = arith.constant 0 : index
    %8 = vector.load %arg11[%c0_6, %c0_7] : memref<8x64xf32, #tpu.memory_space<vmem>>, vector<8x64xf32>
    tpu.vector_store %arg11[%c0_6, %c0_7], %7 {strides = array<i32>} : memref<8x64xf32, #tpu.memory_space<vmem>>, vector<8x64xf32>,
    %c0_i32_8 = arith.constant 0 : i32
    %9 = arith.cmpi eq, %arg1, %c0_i32_8 : i32
    %10 = arith.extui %9 : i1 to i32
    %c0_i32_9 = arith.constant 0 : i32
    %11 = arith.cmpi ne, %10, %c0_i32_9 : i32
    scf.if %11 {
      %c0_i32_12 = arith.constant 0 : i32
      %15 = arith.cmpi eq, %arg2, %c0_i32_12 : i32
      %16 = arith.extui %15 : i1 to i32
      %c0_i32_13 = arith.constant 0 : i32
      %17 = arith.cmpi ne, %16, %c0_i32_13 : i32
      scf.if %17 {
        %cst_21 = arith.constant 0.000000e+00 : f32
        %23 = vector.broadcast %cst_21 : f32 to vector<8x8xf32>
        %c0_22 = arith.constant 0 : index
        %c0_23 = arith.constant 0 : index
        %24 = vector.load %arg12[%c0_22, %c0_23] : memref<8x8xf32, #tpu.memory_space<vmem>>, vector<8x8xf32>
        tpu.vector_store %arg12[%c0_22, %c0_23], %23 {strides = array<i32>} : memref<8x8xf32, #tpu.memory_space<vmem>>, vector<8x8xf32>,
      } else {
      }
      %c0_14 = arith.constant 0 : index
      %c0_15 = arith.constant 0 : index
      %18 = vector.load %arg12[%c0_14, %c0_15] : memref<8x8xf32, #tpu.memory_space<vmem>>, vector<8x8xf32>
      %c0_16 = arith.constant 0 : index
      %c0_17 = arith.constant 0 : index
      %19 = vector.load %arg6[%c0_16, %c0_17] : memref<32x8xf32, #tpu.memory_space<vmem>>, vector<32x8xf32>
      %cst_18 = arith.constant dense<0.000000e+00> : vector<8x8xf32>
      %20 = tpu.matmul %3, %19, %cst_18 {dimension_numbers = #tpu.dot_dimension_numbers<[1], [0], [0], [1], [0, 0, 1, 1], [], []>} : vector<8x32xf32>, vector<32x8xf32>, vector<8x8xf32> -> vector<8x8xf32>
      %21 = arith.addf %18, %20 : vector<8x8xf32>
      %c0_19 = arith.constant 0 : index
      %c0_20 = arith.constant 0 : index
      %22 = vector.load %arg12[%c0_19, %c0_20] : memref<8x8xf32, #tpu.memory_space<vmem>>, vector<8x8xf32>
      tpu.vector_store %arg12[%c0_19, %c0_20], %21 {strides = array<i32>} : memref<8x8xf32, #tpu.memory_space<vmem>>, vector<8x8xf32>,
    } else {
    }
    %c0_i32_10 = arith.constant 0 : i32
    %12 = arith.cmpi eq, %arg2, %c0_i32_10 : i32
    %13 = arith.extui %12 : i1 to i32
    %c0_i32_11 = arith.constant 0 : i32
    %14 = arith.cmpi ne, %13, %c0_i32_11 : i32
    scf.if %14 {
      %c0_12 = arith.constant 0 : index
      %c0_13 = arith.constant 0 : index
      %15 = vector.load %arg12[%c0_12, %c0_13] : memref<8x8xf32, #tpu.memory_space<vmem>>, vector<8x8xf32>
      %c0_14 = arith.constant 0 : index
      %c0_15 = arith.constant 0 : index
      %16 = vector.load %arg7[%c0_14, %c0_15] : memref<8x64xf32, #tpu.memory_space<vmem>>, vector<8x64xf32>
      %cst_16 = arith.constant dense<0.000000e+00> : vector<8x64xf32>
      %17 = tpu.matmul %15, %16, %cst_16 {dimension_numbers = #tpu.dot_dimension_numbers<[1], [0], [0], [1], [0, 0, 1, 1], [], []>} : vector<8x8xf32>, vector<8x64xf32>, vector<8x64xf32> -> vector<8x64xf32>
      %cst_17 = arith.constant 2.000000e+00 : f32
      %18 = vector.broadcast %cst_17 : f32 to vector<8x64xf32>
      %19 = arith.mulf %18, %17 : vector<8x64xf32>
      %c0_18 = arith.constant 0 : index
      %c0_19 = arith.constant 0 : index
      %20 = vector.load %arg8[%c0_18, %c0_19] : memref<8x8xf32, #tpu.memory_space<vmem>>, vector<8x8xf32>
      %cst_20 = arith.constant dense<0.000000e+00> : vector<8x8xf32>
      %21 = tpu.matmul %15, %20, %cst_20 {dimension_numbers = #tpu.dot_dimension_numbers<[1], [0], [0], [1], [0, 0, 1, 1], [], []>} : vector<8x8xf32>, vector<8x8xf32>, vector<8x8xf32> -> vector<8x8xf32>
      %22 = arith.mulf %21, %15 : vector<8x8xf32>
      %cst_21 = arith.constant dense<0.000000e+00> : vector<8xf32>
      %23 = vector.multi_reduction <add>, %22, %cst_21 [1] : vector<8x8xf32> to vector<8xf32>
      %24 = vector.shape_cast %23 : vector<8xf32> to vector<8x1xf32>
      %cst_22 = arith.constant 4.000000e+00 : f32
      %25 = vector.broadcast %cst_22 : f32 to vector<8x1xf32>
      %26 = arith.mulf %25, %24 : vector<8x1xf32>
      %27 = math.sqrt %26 : vector<8x1xf32>
      %cst_23 = arith.constant 9.99999971E-10 : f32
      %28 = vector.broadcast %cst_23 : f32 to vector<8x1xf32>
      %29 = arith.addf %27, %28 : vector<8x1xf32>
      %30 = tpu.reciprocal %29 {approx = true} : vector<8x1xf32> -> vector<8x1xf32>
      %c0_24 = arith.constant 0 : index
      %c0_25 = arith.constant 0 : index
      %31 = vector.load %arg11[%c0_24, %c0_25] : memref<8x64xf32, #tpu.memory_space<vmem>>, vector<8x64xf32>
      %c0_26 = arith.constant 0 : index
      %c0_27 = arith.constant 0 : index
      %32 = vector.load %arg5[%c0_26, %c0_27] : memref<1x64xf32, #tpu.memory_space<vmem>>, vector<1x64xf32>
      %33 = vector.broadcast %32 : vector<1x64xf32> to vector<8x64xf32>
      %34 = arith.addf %31, %33 : vector<8x64xf32>
      %c0_28 = arith.constant 0 : index
      %c0_29 = arith.constant 0 : index
      %35 = vector.load %arg9[%c0_28, %c0_29] : memref<1x64xf32, #tpu.memory_space<vmem>>, vector<1x64xf32>
      %36 = vector.broadcast %30 : vector<8x1xf32> to vector<8x64xf32>
      %37 = arith.mulf %19, %36 : vector<8x64xf32>
      %38 = vector.broadcast %35 : vector<1x64xf32> to vector<8x64xf32>
      %39 = arith.mulf %38, %37 : vector<8x64xf32>
      %40 = arith.addf %34, %39 : vector<8x64xf32>
      %c0_30 = arith.constant 0 : index
      %c0_31 = arith.constant 0 : index
      %41 = vector.load %arg10[%c0_30, %c0_31] : memref<8x64xf32, #tpu.memory_space<vmem>>, vector<8x64xf32>
      tpu.vector_store %arg10[%c0_30, %c0_31], %40 {strides = array<i32>} : memref<8x64xf32, #tpu.memory_space<vmem>>, vector<8x64xf32>,
    } else {
    }
    return
  }
  func.func @transform_0(%arg0: i32, %arg1: i32, %arg2: i32) -> (i32, i32) {
    %c0_i32 = arith.constant 0 : i32
    return %arg0, %arg2 : i32, i32
  }
  func.func @transform_1(%arg0: i32, %arg1: i32, %arg2: i32) -> (i32, i32) {
    %c0_i32 = arith.constant 0 : i32
    return %arg1, %arg2 : i32, i32
  }
  func.func @transform_2(%arg0: i32, %arg1: i32, %arg2: i32) -> (i32, i32) {
    %c0_i32 = arith.constant 0 : i32
    %c0_i32_0 = arith.constant 0 : i32
    return %c0_i32, %arg1 : i32, i32
  }
  func.func @transform_3(%arg0: i32, %arg1: i32, %arg2: i32) -> (i32, i32) {
    %c0_i32 = arith.constant 0 : i32
    %c0_i32_0 = arith.constant 0 : i32
    return %arg2, %c0_i32 : i32, i32
  }
  func.func @transform_4(%arg0: i32, %arg1: i32, %arg2: i32) -> (i32, i32) {
    %c0_i32 = arith.constant 0 : i32
    %c0_i32_0 = arith.constant 0 : i32
    return %c0_i32, %arg1 : i32, i32
  }
  func.func @transform_5(%arg0: i32, %arg1: i32, %arg2: i32) -> (i32, i32) {
    %c0_i32 = arith.constant 0 : i32
    %c0_i32_0 = arith.constant 0 : i32
    %c0_i32_1 = arith.constant 0 : i32
    return %c0_i32, %c0_i32_0 : i32, i32
  }
  func.func @transform_6(%arg0: i32, %arg1: i32, %arg2: i32) -> (i32, i32) {
    %c0_i32 = arith.constant 0 : i32
    %c0_i32_0 = arith.constant 0 : i32
    return %c0_i32, %arg1 : i32, i32
  }
  func.func @transform_7(%arg0: i32, %arg1: i32, %arg2: i32) -> (i32, i32) {
    %c0_i32 = arith.constant 0 : i32
    return %arg0, %arg1 : i32, i32
  }
}

</mosaic_0001>

<llo_original>
// kernel: tpu_custom_call.1
$region0: #{tpu_custom_call.1}
  #allocation0 [shape = 'u32[]', space=smem, size = 0x4, offset = 0x4, fixed_abs, tag = 'smem constant byte address 0x4 - core index']
  #allocation1 [shape = 'u32[72,128]{1,0:T(1,128)}', space=vmem, size = 0x9000, scoped, tag = 'internal scratch']
  #allocation2 [shape = 'f32[8,64]{1,0:T(8,128)}', space=vmem, size = 0x1000, scoped, tag = 'scratch operand']
  #allocation3 [shape = 'f32[8,8]{1,0:T(8,128)}', space=vmem, size = 0x1000, scoped, tag = 'scratch operand']
  %s0 = inlined_call_operand.vmem [shape: f32[8,32], index: 0, kind: input, shape index: {}]
  %s1 = inlined_call_operand.vmem [shape: f32[64,32], index: 1, kind: input, shape index: {}]
  %s2 = inlined_call_operand.vmem [shape: f32[1,64], index: 2, kind: input, shape index: {}]
  %s3 = inlined_call_operand.vmem [shape: f32[32,8], index: 3, kind: input, shape index: {}]
  %s4 = inlined_call_operand.vmem [shape: f32[8,64], index: 4, kind: input, shape index: {}]
  %s5 = inlined_call_operand.vmem [shape: f32[8,8], index: 5, kind: input, shape index: {}]
  %s6 = inlined_call_operand.vmem [shape: f32[1,64], index: 6, kind: input, shape index: {}]
  %s7 = inlined_call_operand.hbm [shape: f32[8,64], index: 7, kind: output, shape index: {}]
  %s8 = sld [smem:[#allocation0]]
  $region54: #{tpu_custom_call.1} parent=0
    _
  %s10 = ssub.s32 1, %s8
  %s11 = scalar_select 0, %s10, %s8
  $region1: #{tpu_custom_call.1} parent=0
    #allocation4 [shape = 'u8[4096]{0}', space=vmem, size = 0x1000, scoped, tag = 'output window, operand 0, single buffered']
    #allocation5 [shape = 's32[1]{0}', space=sflag, size = 0x4, scoped, tag = 'scoped memory for tpu_custom_call.1']
    %12 = vsyncpa [#allocation5], 0
    // Predicated region
    $region2: #{tpu_custom_call.1} parent=1 // pred_check
      _
    $region3: #{tpu_custom_call.1} parent=1 // pred_check_branch
      %14 = sbr.rel (0) target = $region5
    $region4: #{tpu_custom_call.1} parent=1 // pred_region
      _
    $region5: #{tpu_custom_call.1} parent=1 // pred_fallthru
      _
    // Predicated region
    $region6: #{tpu_custom_call.1} parent=1 // pred_check
      _
    $region7: #{tpu_custom_call.1} parent=1 // pred_check_branch
      %16 = sbr.rel (0) target = $region9
    $region8: #{tpu_custom_call.1} parent=1 // pred_region
      _
    $region9: #{tpu_custom_call.1} parent=1 // pred_fallthru
      _
    // Predicated region
    $region10: #{tpu_custom_call.1} parent=1 // pred_check
      _
    $region11: #{tpu_custom_call.1} parent=1 // pred_check_branch
      %18 = sbr.rel (0) target = $region13
    $region12: #{tpu_custom_call.1} parent=1 // pred_region
      _
    $region13: #{tpu_custom_call.1} parent=1 // pred_fallthru
      _
    // Predicated region
    $region14: #{tpu_custom_call.1} parent=1 // pred_check
      _
    $region15: #{tpu_custom_call.1} parent=1 // pred_check_branch
      %20 = sbr.rel (0) target = $region17
    $region16: #{tpu_custom_call.1} parent=1 // pred_region
      _
    $region17: #{tpu_custom_call.1} parent=1 // pred_fallthru
      _
    // Predicated region
    $region18: #{tpu_custom_call.1} parent=1 // pred_check
      _
    $region19: #{tpu_custom_call.1} parent=1 // pred_check_branch
      %22 = sbr.rel (0) target = $region21
    $region20: #{tpu_custom_call.1} parent=1 // pred_region
      _
    $region21: #{tpu_custom_call.1} parent=1 // pred_fallthru
      _
    // Predicated region
    $region22: #{tpu_custom_call.1} parent=1 // pred_check
      _
    $region23: #{tpu_custom_call.1} parent=1 // pred_check_branch
      %24 = sbr.rel (0) target = $region25
    $region24: #{tpu_custom_call.1} parent=1 // pred_region
      _
    $region25: #{tpu_custom_call.1} parent=1 // pred_fallthru
      _
    // Predicated region
    $region26: #{tpu_custom_call.1} parent=1 // pred_check
      _
    $region27: #{tpu_custom_call.1} parent=1 // pred_check_branch
      %26 = sbr.rel (0) target = $region29
    $region28: #{tpu_custom_call.1} parent=1 // pred_region
      _
    $region29: #{tpu_custom_call.1} parent=1 // pred_fallthru
      _
    %p27 = scmp.eq.s32.totalorder 0, 0
    // Predicated region
    $region30: #{tpu_custom_call.1} parent=1 // pred_check
      %p28 = pneg %p27
    $region31: #{tpu_custom_call.1} parent=1 // pred_check_branch
      %30 = sbr.rel (%p28) target = $region33
    $region32: #{tpu_custom_call.1} parent=1 // pred_region
      %vm31 = vcmask 523264
      %32 = vst.msk [vmem:[#allocation2] sm:$0xff] %vm31, 0.0
    $region33: #{tpu_custom_call.1} parent=1 // pred_fallthru
      _
    %v33 = vld [vmem:[%s0] sm:$0xff]
    %v34 = vld [vmem:[#allocation2] sm:$0xff]
    %v35 = vld [vmem:[%s1] sm:$0xff]
    %v36 = vld [vmem:[%s1 + $0x8] sm:$0xff]
    %v37 = vld [vmem:[%s1 + $0x10] sm:$0xff]
    %v38 = vld [vmem:[%s1 + $0x18] sm:$0xff]
    %v39 = vld [vmem:[%s1 + $0x20] sm:$0xff]
    %v40 = vld [vmem:[%s1 + $0x28] sm:$0xff]
    %v41 = vld [vmem:[%s1 + $0x30] sm:$0xff]
    %v42 = vld [vmem:[%s1 + $0x38] sm:$0xff]
    %vm43 = vcmask 261120
    %v45 = vsel %vm43, %v33, 0
    %v48 = vsel %vm43, %v35, 0
    %v51 = vsel %vm43, %v36, 0
    %v54 = vsel %vm43, %v37, 0
    %v57 = vsel %vm43, %v38, 0
    %v60 = vsel %vm43, %v39, 0
    %v63 = vsel %vm43, %v40, 0
    %v66 = vsel %vm43, %v41, 0
    %v69 = vsel %vm43, %v42, 0
    %71 = vmatpush.xpose.msra.mxu0 0.0
    %72 = vmatpush.xpose.msra.mxu0 0.0
    %73 = vmatpush.xpose.msra.mxu0 0.0
    %74 = vmatpush.xpose.msra.mxu0 0.0
    %75 = vmatpush.xpose.msra.mxu0 0.0
    %76 = vmatpush.xpose.msra.mxu0 0.0
    %77 = vmatpush.xpose.msra.mxu0 0.0
    %78 = vmatpush.xpose.msra.mxu0 0.0
    %79 = vmatpush.xpose.msra.mxu0 %v69
    %80 = vmatpush.xpose.msra.mxu0 %v66
    %81 = vmatpush.xpose.msra.mxu0 %v63
    %82 = vmatpush.xpose.msra.mxu0 %v60
    %83 = vmatpush.xpose.msra.mxu0 %v57
    %84 = vmatpush.xpose.msra.mxu0 %v54
    %85 = vmatpush.xpose.msra.mxu0 %v51
    %86 = vmatpush.xpose.msra.mxu0 %v48
    %87 = vmatmul.f32.gmra.mxu0 %v45
    %v88 = vpop.f32.mrf.mxu0
    %v89 = vadd.f32 0.0, %v88
    %90 = vdwg.mxu0
    %v91 = vadd.f32 %v34, %v89
    %vm92 = vcmask 523264
    %93 = vst.msk [vmem:[#allocation2] sm:$0xff] %vm92, %v91
    %p94 = scmp.eq.s32.totalorder 0, 0
    // Predicated region
    $region34: #{tpu_custom_call.1} parent=1 // pred_check
      %p95 = pneg %p94
    $region35: #{tpu_custom_call.1} parent=1 // pred_check_branch
      %97 = sbr.rel (%p95) target = $region37
    $region36: #{tpu_custom_call.1} parent=1 // pred_region
      // Predicated region
      $region38: #{tpu_custom_call.1} parent=36 // pred_check
        %p98 = pneg %p27
      $region39: #{tpu_custom_call.1} parent=36 // pred_check_branch
        %100 = sbr.rel (%p98) target = $region41
      $region40: #{tpu_custom_call.1} parent=36 // pred_region
        %vm101 = vcmask 64512
        %102 = vst.msk [vmem:[#allocation3] sm:$0xff] %vm101, 0.0
      $region41: #{tpu_custom_call.1} parent=36 // pred_fallthru
        _
      %v103 = vld [vmem:[#allocation3] sm:$0xff]
      %v104 = vld [vmem:[%s3] sm:$0xff]
      %v105 = vld [vmem:[%s3 + $0x8] sm:$0xff]
      %v106 = vld [vmem:[%s3 + $0x10] sm:$0xff]
      %v107 = vld [vmem:[%s3 + $0x18] sm:$0xff]
      %108 = vmatpush.msra.mxu0 0.0
      %109 = vmatpush.msra.mxu0 0.0
      %110 = vmatpush.msra.mxu0 0.0
      %111 = vmatpush.msra.mxu0 0.0
      %112 = vmatpush.msra.mxu0 0.0
      %113 = vmatpush.msra.mxu0 0.0
      %114 = vmatpush.msra.mxu0 0.0
      %115 = vmatpush.msra.mxu0 0.0
      %116 = vmatpush.msra.mxu0 0.0
      %117 = vmatpush.msra.mxu0 0.0
      %118 = vmatpush.msra.mxu0 0.0
      %119 = vmatpush.msra.mxu0 0.0
      %120 = vmatpush.msra.mxu0 %v107
      %121 = vmatpush.msra.mxu0 %v106
      %122 = vmatpush.msra.mxu0 %v105
      %123 = vmatpush.msra.mxu0 %v104
      %124 = vmatmul.f32.gmra.mxu0 %v45
      %v125 = vpop.f32.mrf.mxu0
      %v126 = vadd.f32 0.0, %v125
      %127 = vdwg.mxu0
      %v128 = vadd.f32 %v103, %v126
      %vm129 = vcmask 64512
      %130 = vst.msk [vmem:[#allocation3] sm:$0xff] %vm129, %v128
    $region37: #{tpu_custom_call.1} parent=1 // pred_fallthru
      _
    // Predicated region
    $region42: #{tpu_custom_call.1} parent=1 // pred_check
      %p131 = pneg %p27
    $region43: #{tpu_custom_call.1} parent=1 // pred_check_branch
      %133 = sbr.rel (%p131) target = $region45
    $region44: #{tpu_custom_call.1} parent=1 // pred_region
      %v134 = vld [vmem:[#allocation3] sm:$0xff]
      %v135 = vld [vmem:[%s4] sm:$0xff]
      %vm136 = vcmask 64512
      %v138 = vsel %vm136, %v134, 0
      %140 = vmatpush.msra.mxu0 0.0
      %141 = vmatpush.msra.mxu0 0.0
      %142 = vmatpush.msra.mxu0 0.0
      %143 = vmatpush.msra.mxu0 0.0
      %144 = vmatpush.msra.mxu0 0.0
      %145 = vmatpush.msra.mxu0 0.0
      %146 = vmatpush.msra.mxu0 0.0
      %147 = vmatpush.msra.mxu0 0.0
      %148 = vmatpush.msra.mxu0 0.0
      %149 = vmatpush.msra.mxu0 0.0
      %150 = vmatpush.msra.mxu0 0.0
      %151 = vmatpush.msra.mxu0 0.0
      %152 = vmatpush.msra.mxu0 0.0
      %153 = vmatpush.msra.mxu0 0.0
      %154 = vmatpush.msra.mxu0 0.0
      %155 = vmatpush.msra.mxu0 %v135
      %156 = vmatmul.f32.gmra.mxu0 %v138
      %v157 = vpop.f32.mrf.mxu0
      %v158 = vadd.f32 0.0, %v157
      %159 = vdwg.mxu0
      %v160 = vmul.f32 %v158, 2.0
      %v161 = vld [vmem:[%s5] sm:$0xff]
      %162 = vmatpush.msra.mxu0 0.0
      %163 = vmatpush.msra.mxu0 0.0
      %164 = vmatpush.msra.mxu0 0.0
      %165 = vmatpush.msra.mxu0 0.0
      %166 = vmatpush.msra.mxu0 0.0
      %167 = vmatpush.msra.mxu0 0.0
      %168 = vmatpush.msra.mxu0 0.0
      %169 = vmatpush.msra.mxu0 0.0
      %170 = vmatpush.msra.mxu0 0.0
      %171 = vmatpush.msra.mxu0 0.0
      %172 = vmatpush.msra.mxu0 0.0
      %173 = vmatpush.msra.mxu0 0.0
      %174 = vmatpush.msra.mxu0 0.0
      %175 = vmatpush.msra.mxu0 0.0
      %176 = vmatpush.msra.mxu0 0.0
      %177 = vmatpush.msra.mxu0 %v161
      %178 = vmatmul.f32.gmra.mxu0 %v138
      %v179 = vpop.f32.mrf.mxu0
      %v180 = vadd.f32 0.0, %v179
      %181 = vdwg.mxu0
      %v182 = vmul.f32 %v180, %v134
      %v183 = vsel %vm136, %v182, 0.0
      %184 = vadd.xlane.f32.xlu0 %v183
      %v185 = vpop.xlane.xlu0 %184
      %v186 = vmul.f32 %v185, 4.0
      %v187 = vrsqrt.pop %v186
      %v188 = vmul.f32 %v187, %v186
      %v189 = vmul.f32 %v188, %v187
      %v190 = vmul.f32 0.5, %v189
      %v191 = vsub.f32 1.5, %v190
      %v192 = vmul.f32 %v187, %v191
      %v193 = vmul.f32 %v186, %v192
      %vm194 = vcmp.eq.f32.partialorder %v186, inf
      %v195 = vsel %vm194, %v186, %v193
      %vm196 = vcmp.eq.f32.partialorder %v186, 0.0
      %v197 = vand.u32 %v186, 2147483648
      %v198 = vsel %vm196, %v197, %v195
      %v199 = vadd.f32 %v198, 1e-09
      %v200 = vrcp.pop %v199
      %v201 = vld [vmem:[#allocation2] sm:$0xff]
      %v202 = vld [vmem:[%s2] sm:$0x1]
      %v204 = vperm.slane %v202, 0
      %v206 = vadd.f32 %v201, %v204
      %v207 = vld [vmem:[%s6] sm:$0x1]
      %v208 = vmul.f32 %v160, %v200
      %v210 = vperm.slane %v207, 0
      %v212 = vmul.f32 %v210, %v208
      %v213 = vadd.f32 %v206, %v212
      %214 = vst.msk [vmem:[#allocation4] sm:$0xff] %vm92, %v213
    $region45: #{tpu_custom_call.1} parent=1 // pred_fallthru
      _
    // Predicated region
    $region46: #{tpu_custom_call.1} parent=1 // pred_check
      _
    $region47: #{tpu_custom_call.1} parent=1 // pred_check_branch
      %216 = sbr.rel (0) target = $region49
    $region48: #{tpu_custom_call.1} parent=1 // pred_region
      %218 = vsyncadd [#allocation5], 0
      %s220 = sshll.u32 [#allocation4], 4
      %s221 = int_to_ptr.vmem [resolvable:$true] %s220
      %s222 = sshll.u32 %s7, 4
      %s223 = int_to_ptr.hbm [resolvable:$true] %s222
      %225 = dma.vmem_to_hbm [thread:$0]  %s221, 128, %s223, [#allocation5]
    $region49: #{tpu_custom_call.1} parent=1 // pred_fallthru
      _
    // Predicated region
    $region50: #{tpu_custom_call.1} parent=1 // pred_check
      _
    $region51: #{tpu_custom_call.1} parent=1 // pred_check_branch
      %227 = sbr.rel (0) target = $region53
    $region52: #{tpu_custom_call.1} parent=1 // pred_region
      %229 = dma.done [#allocation5], 128
    $region53: #{tpu_custom_call.1} parent=1 // pred_fallthru
      _
    %230 = vsyncpa [#allocation5], 1

</llo_original>
